<compile_context>
chip_gen: v5e
topology: v5e:2x2
jax: 0.10.0
libtpu: 0.0.40
codegen_flags: <defaults>
</compile_context>

<pallas_src>
import functools

import jax
import jax.numpy as jnp
from jax import lax
from jax.experimental import pallas as pl
from jax.experimental.pallas import tpu as pltpu

_LANES = 128          # vreg lane width
_SUBLANES = 8         # vreg sublane count (f32)
_SLAB_ROWS = 2048     # rows per grid step: (2048, 128) f32 = 1 MiB input tile
_ROW_CHUNK = 64       # rows per inner-loop iteration (8 vregs per live value)


def _round_up(a: int, b: int) -> int:
    return ((a + b - 1) // b) * b


def mlp_kernel(x_ref, w1_ref, b1_ref, w2_ref, b2_ref, o_ref, *, row_chunk):
    """Fused Linear(1,Hid) -> ReLU -> Linear(Hid,1); batch on (rows, lanes).

    x_ref : (slab, 128) VMEM   activation slab, batch lane-dense
    w1_ref: (Hid,)      SMEM   hidden-layer weights (scalar per unit)
    b1_ref: (Hid,)      SMEM   hidden-layer biases
    w2_ref: (Hid,)      SMEM   output-layer weights
    b2_ref: (1,)        SMEM   output bias
    o_ref : (slab, 128) VMEM   lane-dense output slab
    """
    hid = w1_ref.shape[0]
    slab = x_ref.shape[0]
    b2 = b2_ref[0]

    def body(c, carry):
        r0 = pl.multiple_of(c * row_chunk, row_chunk)
        xs = x_ref[pl.ds(r0, row_chunk), :]                    # (chunk, 128)
        acc = jnp.zeros(xs.shape, jnp.float32)
        for k in range(hid):                                   # static unroll
            h = jnp.maximum(xs * w1_ref[k] + b1_ref[k], 0.0)   # VPU only
            acc = acc + h * w2_ref[k]
        o_ref[pl.ds(r0, row_chunk), :] = (acc + b2).astype(o_ref.dtype)
        return carry

    lax.fori_loop(0, slab // row_chunk, body, 0)


def net_forward(x, w1, b1, w2, b2):
    """x: (N, 1) f32.  w1: (1, Hid), b1: (1, Hid), w2: (Hid, 1), b2: (1, 1).

    NOTE: w1/w2 are input-major (transpose of torch nn.Linear's
    (out_features, in_features) storage) -- transpose when porting weights.
    """
    N = x.shape[0]
    Hid = w1.shape[1]
    dtype = x.dtype

    # ---- batch -> lane-dense (rows, 128) slab -------------------------------
    n_pad = _round_up(N, _SUBLANES * _LANES)
    x_flat = x.reshape(N)
    if n_pad != N:
        # TODO(synk): this <=1023-element tail pad still costs one HBM copy of
        # x; a manual-DMA masked tail store would remove it entirely.
        x_flat = jnp.pad(x_flat, (0, n_pad - N))
    rows = n_pad // _LANES
    x2d = x_flat.reshape(rows, _LANES)

    # ---- slab size: ~1 MiB per step, >= 2 steps when there is enough work ---
    slab = min(_SLAB_ROWS, rows)
    if _SUBLANES < rows <= _SLAB_ROWS:
        # split mid-sized problems into 2 parallel steps (v7x: 2 TensorCores)
        slab = max(_SUBLANES, _round_up(pl.cdiv(rows, 2), _SUBLANES))
    num_steps = pl.cdiv(rows, slab)
    row_chunk = _ROW_CHUNK if slab % _ROW_CHUNK == 0 else _SUBLANES

    # ---- parameters as SMEM scalar vectors ----------------------------------
    w1_s = w1.reshape(Hid).astype(jnp.float32)
    b1_s = b1.reshape(Hid).astype(jnp.float32)
    w2_s = w2.reshape(Hid).astype(jnp.float32)
    b2_s = b2.reshape(1).astype(jnp.float32)

    out2d = pl.pallas_call(
        functools.partial(mlp_kernel, row_chunk=row_chunk),
        out_shape=jax.ShapeDtypeStruct((rows, _LANES), dtype),
        grid_spec=pltpu.PrefetchScalarGridSpec(
            num_scalar_prefetch=0,
            grid=(num_steps,),
            in_specs=[
                # 1 MiB lane-dense batch slab, double-buffered by Pallas
                pl.BlockSpec((slab, _LANES), lambda i: (i, 0)),
                # tiny weights/biases live in SMEM as scalars
                pl.BlockSpec(memory_space=pltpu.MemorySpace.SMEM),
                pl.BlockSpec(memory_space=pltpu.MemorySpace.SMEM),
                pl.BlockSpec(memory_space=pltpu.MemorySpace.SMEM),
                pl.BlockSpec(memory_space=pltpu.MemorySpace.SMEM),
            ],
            out_specs=pl.BlockSpec((slab, _LANES), lambda i: (i, 0)),
        ),
        compiler_params=pltpu.CompilerParams(
            dimension_semantics=("parallel",),
            # 2x(in + out) slabs + elementwise temps ~= 6-9 MiB: fits every
            # generation (v5e scoped default 16 MiB, v7x physical 64 MiB).
            vmem_limit_bytes=32 * 1024 * 1024,
        ),
        cost_estimate=pl.CostEstimate(
            flops=5 * Hid * n_pad,        # mul,add,max,mul,add per hidden unit
            transcendentals=0,
            bytes_accessed=8 * n_pad,     # read x + write y (f32)
        ),
    )(x2d, w1_s, b1_s, w2_s, b2_s)

    # Drop padding, restore PyTorch's (N, 1) layout (no-op when N == n_pad).
    return out2d.reshape(n_pad)[:N].reshape(N, 1)


def init_params(key):
    """Mimics nn.Linear's U(-1/sqrt(fan_in), 1/sqrt(fan_in)) init."""
    k1, k2, k3, k4 = jax.random.split(key, 4)
    bound1 = 1.0                      # fan_in = 1
    bound2 = 1.0 / jnp.sqrt(20.0)     # fan_in = 20
    w1 = jax.random.uniform(k1, (1, 20), jnp.float32, -bound1, bound1)
    b1 = jax.random.uniform(k2, (1, 20), jnp.float32, -bound1, bound1)
    w2 = jax.random.uniform(k3, (20, 1), jnp.float32, -bound2, bound2)
    b2 = jax.random.uniform(k4, (1, 1), jnp.float32, -bound2, bound2)
    return w1, b1, w2, b2


def _reference(x, w1, b1, w2, b2):
    return jnp.maximum(x @ w1 + b1, 0.0) @ w2 + b2


if __name__ == "__main__":
    key = jax.random.PRNGKey(0)
    w1, b1, w2, b2 = init_params(key)

    # Reference workload: x = unsqueeze(linspace(-1, 1, 1000), dim=1).
    # The 5000-element case additionally exercises the multi-step grid and the
    # ragged-tail (partial last block) path.
    for n in (1000, 5000):
        x = jnp.linspace(-1.0, 1.0, n, dtype=jnp.float32).reshape(n, 1)
        out = jax.block_until_ready(net_forward(x, w1, b1, w2, b2))
        ref = _reference(x, w1, b1, w2, b2)
        assert out.shape == (n, 1)
        assert jnp.allclose(out, ref, atol=1e-5, rtol=1e-5), float(
            jnp.max(jnp.abs(out - ref)))

    print("KERNEL_OK")
</pallas_src>

<mosaic_0001>
module attributes {stable_mosaic.version = 11 : i64} {
  func.func @mlp_kernel(%arg0: i32, %arg1: memref<8x128xf32, #tpu.memory_space<vmem>>, %arg2: memref<20xf32, #tpu.memory_space<smem>>, %arg3: memref<20xf32, #tpu.memory_space<smem>>, %arg4: memref<20xf32, #tpu.memory_space<smem>>, %arg5: memref<1xf32, #tpu.memory_space<smem>>, %arg6: memref<8x128xf32, #tpu.memory_space<vmem>>) attributes {dimension_semantics = [#tpu.dimension_semantics<parallel>], iteration_bounds = array<i64: 1>, scalar_prefetch = 0 : i64, scratch_operands = 0 : i64, tpu.core_type = #tpu.core_type<tc>, window_params = [{transform_indices = @transform_0, window_bounds = array<i64: 8, 128>}, {transform_indices = @transform_1, window_bounds = array<i64: 20>}, {transform_indices = @transform_2, window_bounds = array<i64: 20>}, {transform_indices = @transform_3, window_bounds = array<i64: 20>}, {transform_indices = @transform_4, window_bounds = array<i64: 1>}, {transform_indices = @transform_5, window_bounds = array<i64: 8, 128>}]} {
    %c0 = arith.constant 0 : index
    %0 = memref.load %arg5[%c0] : memref<1xf32, #tpu.memory_space<smem>>
    %c0_i32 = arith.constant 0 : i32
    %c8_i32 = arith.constant 8 : i32
    %1 = arith.muli %c0_i32, %c8_i32 : i32
    %2 = tpu.assume_multiple %1, 8 : i32
    %3 = arith.index_cast %2 : i32 to index
    %c0_0 = arith.constant 0 : index
    %4 = vector.load %arg1[%3, %c0_0] : memref<8x128xf32, #tpu.memory_space<vmem>>, vector<8x128xf32>
    %cst = arith.constant 0.000000e+00 : f32
    %5 = vector.broadcast %cst : f32 to vector<8x128xf32>
    %c0_1 = arith.constant 0 : index
    %6 = memref.load %arg2[%c0_1] : memref<20xf32, #tpu.memory_space<smem>>
    %7 = vector.broadcast %6 : f32 to vector<8x128xf32>
    %8 = arith.mulf %4, %7 : vector<8x128xf32>
    %c0_2 = arith.constant 0 : index
    %9 = memref.load %arg3[%c0_2] : memref<20xf32, #tpu.memory_space<smem>>
    %10 = vector.broadcast %9 : f32 to vector<8x128xf32>
    %11 = arith.addf %8, %10 : vector<8x128xf32>
    %cst_3 = arith.constant 0.000000e+00 : f32
    %12 = vector.broadcast %cst_3 : f32 to vector<8x128xf32>
    %13 = arith.maximumf %11, %12 : vector<8x128xf32>
    %c0_4 = arith.constant 0 : index
    %14 = memref.load %arg4[%c0_4] : memref<20xf32, #tpu.memory_space<smem>>
    %15 = vector.broadcast %14 : f32 to vector<8x128xf32>
    %16 = arith.mulf %13, %15 : vector<8x128xf32>
    %17 = arith.addf %5, %16 : vector<8x128xf32>
    %c1 = arith.constant 1 : index
    %18 = memref.load %arg2[%c1] : memref<20xf32, #tpu.memory_space<smem>>
    %19 = vector.broadcast %18 : f32 to vector<8x128xf32>
    %20 = arith.mulf %4, %19 : vector<8x128xf32>
    %c1_5 = arith.constant 1 : index
    %21 = memref.load %arg3[%c1_5] : memref<20xf32, #tpu.memory_space<smem>>
    %22 = vector.broadcast %21 : f32 to vector<8x128xf32>
    %23 = arith.addf %20, %22 : vector<8x128xf32>
    %cst_6 = arith.constant 0.000000e+00 : f32
    %24 = vector.broadcast %cst_6 : f32 to vector<8x128xf32>
    %25 = arith.maximumf %23, %24 : vector<8x128xf32>
    %c1_7 = arith.constant 1 : index
    %26 = memref.load %arg4[%c1_7] : memref<20xf32, #tpu.memory_space<smem>>
    %27 = vector.broadcast %26 : f32 to vector<8x128xf32>
    %28 = arith.mulf %25, %27 : vector<8x128xf32>
    %29 = arith.addf %17, %28 : vector<8x128xf32>
    %c2 = arith.constant 2 : index
    %30 = memref.load %arg2[%c2] : memref<20xf32, #tpu.memory_space<smem>>
    %31 = vector.broadcast %30 : f32 to vector<8x128xf32>
    %32 = arith.mulf %4, %31 : vector<8x128xf32>
    %c2_8 = arith.constant 2 : index
    %33 = memref.load %arg3[%c2_8] : memref<20xf32, #tpu.memory_space<smem>>
    %34 = vector.broadcast %33 : f32 to vector<8x128xf32>
    %35 = arith.addf %32, %34 : vector<8x128xf32>
    %cst_9 = arith.constant 0.000000e+00 : f32
    %36 = vector.broadcast %cst_9 : f32 to vector<8x128xf32>
    %37 = arith.maximumf %35, %36 : vector<8x128xf32>
    %c2_10 = arith.constant 2 : index
    %38 = memref.load %arg4[%c2_10] : memref<20xf32, #tpu.memory_space<smem>>
    %39 = vector.broadcast %38 : f32 to vector<8x128xf32>
    %40 = arith.mulf %37, %39 : vector<8x128xf32>
    %41 = arith.addf %29, %40 : vector<8x128xf32>
    %c3 = arith.constant 3 : index
    %42 = memref.load %arg2[%c3] : memref<20xf32, #tpu.memory_space<smem>>
    %43 = vector.broadcast %42 : f32 to vector<8x128xf32>
    %44 = arith.mulf %4, %43 : vector<8x128xf32>
    %c3_11 = arith.constant 3 : index
    %45 = memref.load %arg3[%c3_11] : memref<20xf32, #tpu.memory_space<smem>>
    %46 = vector.broadcast %45 : f32 to vector<8x128xf32>
    %47 = arith.addf %44, %46 : vector<8x128xf32>
    %cst_12 = arith.constant 0.000000e+00 : f32
    %48 = vector.broadcast %cst_12 : f32 to vector<8x128xf32>
    %49 = arith.maximumf %47, %48 : vector<8x128xf32>
    %c3_13 = arith.constant 3 : index
    %50 = memref.load %arg4[%c3_13] : memref<20xf32, #tpu.memory_space<smem>>
    %51 = vector.broadcast %50 : f32 to vector<8x128xf32>
    %52 = arith.mulf %49, %51 : vector<8x128xf32>
    %53 = arith.addf %41, %52 : vector<8x128xf32>
    %c4 = arith.constant 4 : index
    %54 = memref.load %arg2[%c4] : memref<20xf32, #tpu.memory_space<smem>>
    %55 = vector.broadcast %54 : f32 to vector<8x128xf32>
    %56 = arith.mulf %4, %55 : vector<8x128xf32>
    %c4_14 = arith.constant 4 : index
    %57 = memref.load %arg3[%c4_14] : memref<20xf32, #tpu.memory_space<smem>>
    %58 = vector.broadcast %57 : f32 to vector<8x128xf32>
    %59 = arith.addf %56, %58 : vector<8x128xf32>
    %cst_15 = arith.constant 0.000000e+00 : f32
    %60 = vector.broadcast %cst_15 : f32 to vector<8x128xf32>
    %61 = arith.maximumf %59, %60 : vector<8x128xf32>
    %c4_16 = arith.constant 4 : index
    %62 = memref.load %arg4[%c4_16] : memref<20xf32, #tpu.memory_space<smem>>
    %63 = vector.broadcast %62 : f32 to vector<8x128xf32>
    %64 = arith.mulf %61, %63 : vector<8x128xf32>
    %65 = arith.addf %53, %64 : vector<8x128xf32>
    %c5 = arith.constant 5 : index
    %66 = memref.load %arg2[%c5] : memref<20xf32, #tpu.memory_space<smem>>
    %67 = vector.broadcast %66 : f32 to vector<8x128xf32>
    %68 = arith.mulf %4, %67 : vector<8x128xf32>
    %c5_17 = arith.constant 5 : index
    %69 = memref.load %arg3[%c5_17] : memref<20xf32, #tpu.memory_space<smem>>
    %70 = vector.broadcast %69 : f32 to vector<8x128xf32>
    %71 = arith.addf %68, %70 : vector<8x128xf32>
    %cst_18 = arith.constant 0.000000e+00 : f32
    %72 = vector.broadcast %cst_18 : f32 to vector<8x128xf32>
    %73 = arith.maximumf %71, %72 : vector<8x128xf32>
    %c5_19 = arith.constant 5 : index
    %74 = memref.load %arg4[%c5_19] : memref<20xf32, #tpu.memory_space<smem>>
    %75 = vector.broadcast %74 : f32 to vector<8x128xf32>
    %76 = arith.mulf %73, %75 : vector<8x128xf32>
    %77 = arith.addf %65, %76 : vector<8x128xf32>
    %c6 = arith.constant 6 : index
    %78 = memref.load %arg2[%c6] : memref<20xf32, #tpu.memory_space<smem>>
    %79 = vector.broadcast %78 : f32 to vector<8x128xf32>
    %80 = arith.mulf %4, %79 : vector<8x128xf32>
    %c6_20 = arith.constant 6 : index
    %81 = memref.load %arg3[%c6_20] : memref<20xf32, #tpu.memory_space<smem>>
    %82 = vector.broadcast %81 : f32 to vector<8x128xf32>
    %83 = arith.addf %80, %82 : vector<8x128xf32>
    %cst_21 = arith.constant 0.000000e+00 : f32
    %84 = vector.broadcast %cst_21 : f32 to vector<8x128xf32>
    %85 = arith.maximumf %83, %84 : vector<8x128xf32>
    %c6_22 = arith.constant 6 : index
    %86 = memref.load %arg4[%c6_22] : memref<20xf32, #tpu.memory_space<smem>>
    %87 = vector.broadcast %86 : f32 to vector<8x128xf32>
    %88 = arith.mulf %85, %87 : vector<8x128xf32>
    %89 = arith.addf %77, %88 : vector<8x128xf32>
    %c7 = arith.constant 7 : index
    %90 = memref.load %arg2[%c7] : memref<20xf32, #tpu.memory_space<smem>>
    %91 = vector.broadcast %90 : f32 to vector<8x128xf32>
    %92 = arith.mulf %4, %91 : vector<8x128xf32>
    %c7_23 = arith.constant 7 : index
    %93 = memref.load %arg3[%c7_23] : memref<20xf32, #tpu.memory_space<smem>>
    %94 = vector.broadcast %93 : f32 to vector<8x128xf32>
    %95 = arith.addf %92, %94 : vector<8x128xf32>
    %cst_24 = arith.constant 0.000000e+00 : f32
    %96 = vector.broadcast %cst_24 : f32 to vector<8x128xf32>
    %97 = arith.maximumf %95, %96 : vector<8x128xf32>
    %c7_25 = arith.constant 7 : index
    %98 = memref.load %arg4[%c7_25] : memref<20xf32, #tpu.memory_space<smem>>
    %99 = vector.broadcast %98 : f32 to vector<8x128xf32>
    %100 = arith.mulf %97, %99 : vector<8x128xf32>
    %101 = arith.addf %89, %100 : vector<8x128xf32>
    %c8 = arith.constant 8 : index
    %102 = memref.load %arg2[%c8] : memref<20xf32, #tpu.memory_space<smem>>
    %103 = vector.broadcast %102 : f32 to vector<8x128xf32>
    %104 = arith.mulf %4, %103 : vector<8x128xf32>
    %c8_26 = arith.constant 8 : index
    %105 = memref.load %arg3[%c8_26] : memref<20xf32, #tpu.memory_space<smem>>
    %106 = vector.broadcast %105 : f32 to vector<8x128xf32>
    %107 = arith.addf %104, %106 : vector<8x128xf32>
    %cst_27 = arith.constant 0.000000e+00 : f32
    %108 = vector.broadcast %cst_27 : f32 to vector<8x128xf32>
    %109 = arith.maximumf %107, %108 : vector<8x128xf32>
    %c8_28 = arith.constant 8 : index
    %110 = memref.load %arg4[%c8_28] : memref<20xf32, #tpu.memory_space<smem>>
    %111 = vector.broadcast %110 : f32 to vector<8x128xf32>
    %112 = arith.mulf %109, %111 : vector<8x128xf32>
    %113 = arith.addf %101, %112 : vector<8x128xf32>
    %c9 = arith.constant 9 : index
    %114 = memref.load %arg2[%c9] : memref<20xf32, #tpu.memory_space<smem>>
    %115 = vector.broadcast %114 : f32 to vector<8x128xf32>
    %116 = arith.mulf %4, %115 : vector<8x128xf32>
    %c9_29 = arith.constant 9 : index
    %117 = memref.load %arg3[%c9_29] : memref<20xf32, #tpu.memory_space<smem>>
    %118 = vector.broadcast %117 : f32 to vector<8x128xf32>
    %119 = arith.addf %116, %118 : vector<8x128xf32>
    %cst_30 = arith.constant 0.000000e+00 : f32
    %120 = vector.broadcast %cst_30 : f32 to vector<8x128xf32>
    %121 = arith.maximumf %119, %120 : vector<8x128xf32>
    %c9_31 = arith.constant 9 : index
    %122 = memref.load %arg4[%c9_31] : memref<20xf32, #tpu.memory_space<smem>>
    %123 = vector.broadcast %122 : f32 to vector<8x128xf32>
    %124 = arith.mulf %121, %123 : vector<8x128xf32>
    %125 = arith.addf %113, %124 : vector<8x128xf32>
    %c10 = arith.constant 10 : index
    %126 = memref.load %arg2[%c10] : memref<20xf32, #tpu.memory_space<smem>>
    %127 = vector.broadcast %126 : f32 to vector<8x128xf32>
    %128 = arith.mulf %4, %127 : vector<8x128xf32>
    %c10_32 = arith.constant 10 : index
    %129 = memref.load %arg3[%c10_32] : memref<20xf32, #tpu.memory_space<smem>>
    %130 = vector.broadcast %129 : f32 to vector<8x128xf32>
    %131 = arith.addf %128, %130 : vector<8x128xf32>
    %cst_33 = arith.constant 0.000000e+00 : f32
    %132 = vector.broadcast %cst_33 : f32 to vector<8x128xf32>
    %133 = arith.maximumf %131, %132 : vector<8x128xf32>
    %c10_34 = arith.constant 10 : index
    %134 = memref.load %arg4[%c10_34] : memref<20xf32, #tpu.memory_space<smem>>
    %135 = vector.broadcast %134 : f32 to vector<8x128xf32>
    %136 = arith.mulf %133, %135 : vector<8x128xf32>
    %137 = arith.addf %125, %136 : vector<8x128xf32>
    %c11 = arith.constant 11 : index
    %138 = memref.load %arg2[%c11] : memref<20xf32, #tpu.memory_space<smem>>
    %139 = vector.broadcast %138 : f32 to vector<8x128xf32>
    %140 = arith.mulf %4, %139 : vector<8x128xf32>
    %c11_35 = arith.constant 11 : index
    %141 = memref.load %arg3[%c11_35] : memref<20xf32, #tpu.memory_space<smem>>
    %142 = vector.broadcast %141 : f32 to vector<8x128xf32>
    %143 = arith.addf %140, %142 : vector<8x128xf32>
    %cst_36 = arith.constant 0.000000e+00 : f32
    %144 = vector.broadcast %cst_36 : f32 to vector<8x128xf32>
    %145 = arith.maximumf %143, %144 : vector<8x128xf32>
    %c11_37 = arith.constant 11 : index
    %146 = memref.load %arg4[%c11_37] : memref<20xf32, #tpu.memory_space<smem>>
    %147 = vector.broadcast %146 : f32 to vector<8x128xf32>
    %148 = arith.mulf %145, %147 : vector<8x128xf32>
    %149 = arith.addf %137, %148 : vector<8x128xf32>
    %c12 = arith.constant 12 : index
    %150 = memref.load %arg2[%c12] : memref<20xf32, #tpu.memory_space<smem>>
    %151 = vector.broadcast %150 : f32 to vector<8x128xf32>
    %152 = arith.mulf %4, %151 : vector<8x128xf32>
    %c12_38 = arith.constant 12 : index
    %153 = memref.load %arg3[%c12_38] : memref<20xf32, #tpu.memory_space<smem>>
    %154 = vector.broadcast %153 : f32 to vector<8x128xf32>
    %155 = arith.addf %152, %154 : vector<8x128xf32>
    %cst_39 = arith.constant 0.000000e+00 : f32
    %156 = vector.broadcast %cst_39 : f32 to vector<8x128xf32>
    %157 = arith.maximumf %155, %156 : vector<8x128xf32>
    %c12_40 = arith.constant 12 : index
    %158 = memref.load %arg4[%c12_40] : memref<20xf32, #tpu.memory_space<smem>>
    %159 = vector.broadcast %158 : f32 to vector<8x128xf32>
    %160 = arith.mulf %157, %159 : vector<8x128xf32>
    %161 = arith.addf %149, %160 : vector<8x128xf32>
    %c13 = arith.constant 13 : index
    %162 = memref.load %arg2[%c13] : memref<20xf32, #tpu.memory_space<smem>>
    %163 = vector.broadcast %162 : f32 to vector<8x128xf32>
    %164 = arith.mulf %4, %163 : vector<8x128xf32>
    %c13_41 = arith.constant 13 : index
    %165 = memref.load %arg3[%c13_41] : memref<20xf32, #tpu.memory_space<smem>>
    %166 = vector.broadcast %165 : f32 to vector<8x128xf32>
    %167 = arith.addf %164, %166 : vector<8x128xf32>
    %cst_42 = arith.constant 0.000000e+00 : f32
    %168 = vector.broadcast %cst_42 : f32 to vector<8x128xf32>
    %169 = arith.maximumf %167, %168 : vector<8x128xf32>
    %c13_43 = arith.constant 13 : index
    %170 = memref.load %arg4[%c13_43] : memref<20xf32, #tpu.memory_space<smem>>
    %171 = vector.broadcast %170 : f32 to vector<8x128xf32>
    %172 = arith.mulf %169, %171 : vector<8x128xf32>
    %173 = arith.addf %161, %172 : vector<8x128xf32>
    %c14 = arith.constant 14 : index
    %174 = memref.load %arg2[%c14] : memref<20xf32, #tpu.memory_space<smem>>
    %175 = vector.broadcast %174 : f32 to vector<8x128xf32>
    %176 = arith.mulf %4, %175 : vector<8x128xf32>
    %c14_44 = arith.constant 14 : index
    %177 = memref.load %arg3[%c14_44] : memref<20xf32, #tpu.memory_space<smem>>
    %178 = vector.broadcast %177 : f32 to vector<8x128xf32>
    %179 = arith.addf %176, %178 : vector<8x128xf32>
    %cst_45 = arith.constant 0.000000e+00 : f32
    %180 = vector.broadcast %cst_45 : f32 to vector<8x128xf32>
    %181 = arith.maximumf %179, %180 : vector<8x128xf32>
    %c14_46 = arith.constant 14 : index
    %182 = memref.load %arg4[%c14_46] : memref<20xf32, #tpu.memory_space<smem>>
    %183 = vector.broadcast %182 : f32 to vector<8x128xf32>
    %184 = arith.mulf %181, %183 : vector<8x128xf32>
    %185 = arith.addf %173, %184 : vector<8x128xf32>
    %c15 = arith.constant 15 : index
    %186 = memref.load %arg2[%c15] : memref<20xf32, #tpu.memory_space<smem>>
    %187 = vector.broadcast %186 : f32 to vector<8x128xf32>
    %188 = arith.mulf %4, %187 : vector<8x128xf32>
    %c15_47 = arith.constant 15 : index
    %189 = memref.load %arg3[%c15_47] : memref<20xf32, #tpu.memory_space<smem>>
    %190 = vector.broadcast %189 : f32 to vector<8x128xf32>
    %191 = arith.addf %188, %190 : vector<8x128xf32>
    %cst_48 = arith.constant 0.000000e+00 : f32
    %192 = vector.broadcast %cst_48 : f32 to vector<8x128xf32>
    %193 = arith.maximumf %191, %192 : vector<8x128xf32>
    %c15_49 = arith.constant 15 : index
    %194 = memref.load %arg4[%c15_49] : memref<20xf32, #tpu.memory_space<smem>>
    %195 = vector.broadcast %194 : f32 to vector<8x128xf32>
    %196 = arith.mulf %193, %195 : vector<8x128xf32>
    %197 = arith.addf %185, %196 : vector<8x128xf32>
    %c16 = arith.constant 16 : index
    %198 = memref.load %arg2[%c16] : memref<20xf32, #tpu.memory_space<smem>>
    %199 = vector.broadcast %198 : f32 to vector<8x128xf32>
    %200 = arith.mulf %4, %199 : vector<8x128xf32>
    %c16_50 = arith.constant 16 : index
    %201 = memref.load %arg3[%c16_50] : memref<20xf32, #tpu.memory_space<smem>>
    %202 = vector.broadcast %201 : f32 to vector<8x128xf32>
    %203 = arith.addf %200, %202 : vector<8x128xf32>
    %cst_51 = arith.constant 0.000000e+00 : f32
    %204 = vector.broadcast %cst_51 : f32 to vector<8x128xf32>
    %205 = arith.maximumf %203, %204 : vector<8x128xf32>
    %c16_52 = arith.constant 16 : index
    %206 = memref.load %arg4[%c16_52] : memref<20xf32, #tpu.memory_space<smem>>
    %207 = vector.broadcast %206 : f32 to vector<8x128xf32>
    %208 = arith.mulf %205, %207 : vector<8x128xf32>
    %209 = arith.addf %197, %208 : vector<8x128xf32>
    %c17 = arith.constant 17 : index
    %210 = memref.load %arg2[%c17] : memref<20xf32, #tpu.memory_space<smem>>
    %211 = vector.broadcast %210 : f32 to vector<8x128xf32>
    %212 = arith.mulf %4, %211 : vector<8x128xf32>
    %c17_53 = arith.constant 17 : index
    %213 = memref.load %arg3[%c17_53] : memref<20xf32, #tpu.memory_space<smem>>
    %214 = vector.broadcast %213 : f32 to vector<8x128xf32>
    %215 = arith.addf %212, %214 : vector<8x128xf32>
    %cst_54 = arith.constant 0.000000e+00 : f32
    %216 = vector.broadcast %cst_54 : f32 to vector<8x128xf32>
    %217 = arith.maximumf %215, %216 : vector<8x128xf32>
    %c17_55 = arith.constant 17 : index
    %218 = memref.load %arg4[%c17_55] : memref<20xf32, #tpu.memory_space<smem>>
    %219 = vector.broadcast %218 : f32 to vector<8x128xf32>
    %220 = arith.mulf %217, %219 : vector<8x128xf32>
    %221 = arith.addf %209, %220 : vector<8x128xf32>
    %c18 = arith.constant 18 : index
    %222 = memref.load %arg2[%c18] : memref<20xf32, #tpu.memory_space<smem>>
    %223 = vector.broadcast %222 : f32 to vector<8x128xf32>
    %224 = arith.mulf %4, %223 : vector<8x128xf32>
    %c18_56 = arith.constant 18 : index
    %225 = memref.load %arg3[%c18_56] : memref<20xf32, #tpu.memory_space<smem>>
    %226 = vector.broadcast %225 : f32 to vector<8x128xf32>
    %227 = arith.addf %224, %226 : vector<8x128xf32>
    %cst_57 = arith.constant 0.000000e+00 : f32
    %228 = vector.broadcast %cst_57 : f32 to vector<8x128xf32>
    %229 = arith.maximumf %227, %228 : vector<8x128xf32>
    %c18_58 = arith.constant 18 : index
    %230 = memref.load %arg4[%c18_58] : memref<20xf32, #tpu.memory_space<smem>>
    %231 = vector.broadcast %230 : f32 to vector<8x128xf32>
    %232 = arith.mulf %229, %231 : vector<8x128xf32>
    %233 = arith.addf %221, %232 : vector<8x128xf32>
    %c19 = arith.constant 19 : index
    %234 = memref.load %arg2[%c19] : memref<20xf32, #tpu.memory_space<smem>>
    %235 = vector.broadcast %234 : f32 to vector<8x128xf32>
    %236 = arith.mulf %4, %235 : vector<8x128xf32>
    %c19_59 = arith.constant 19 : index
    %237 = memref.load %arg3[%c19_59] : memref<20xf32, #tpu.memory_space<smem>>
    %238 = vector.broadcast %237 : f32 to vector<8x128xf32>
    %239 = arith.addf %236, %238 : vector<8x128xf32>
    %cst_60 = arith.constant 0.000000e+00 : f32
    %240 = vector.broadcast %cst_60 : f32 to vector<8x128xf32>
    %241 = arith.maximumf %239, %240 : vector<8x128xf32>
    %c19_61 = arith.constant 19 : index
    %242 = memref.load %arg4[%c19_61] : memref<20xf32, #tpu.memory_space<smem>>
    %243 = vector.broadcast %242 : f32 to vector<8x128xf32>
    %244 = arith.mulf %241, %243 : vector<8x128xf32>
    %245 = arith.addf %233, %244 : vector<8x128xf32>
    %246 = vector.broadcast %0 : f32 to vector<8x128xf32>
    %247 = arith.addf %245, %246 : vector<8x128xf32>
    %248 = arith.index_cast %2 : i32 to index
    %c0_62 = arith.constant 0 : index
    %249 = vector.load %arg6[%248, %c0_62] : memref<8x128xf32, #tpu.memory_space<vmem>>, vector<8x128xf32>
    tpu.vector_store %arg6[%248, %c0_62], %247 {strides = array<i32>} : memref<8x128xf32, #tpu.memory_space<vmem>>, vector<8x128xf32>,
    %c1_i32 = arith.constant 1 : i32
    return
  }
  func.func @transform_0(%arg0: i32) -> (i32, i32) {
    %c0_i32 = arith.constant 0 : i32
    %c0_i32_0 = arith.constant 0 : i32
    return %arg0, %c0_i32 : i32, i32
  }
  func.func @transform_1(%arg0: i32) -> i32 {
    %c0_i32 = arith.constant 0 : i32
    %c0_i32_0 = arith.constant 0 : i32
    return %c0_i32 : i32
  }
  func.func @transform_2(%arg0: i32) -> i32 {
    %c0_i32 = arith.constant 0 : i32
    %c0_i32_0 = arith.constant 0 : i32
    return %c0_i32 : i32
  }
  func.func @transform_3(%arg0: i32) -> i32 {
    %c0_i32 = arith.constant 0 : i32
    %c0_i32_0 = arith.constant 0 : i32
    return %c0_i32 : i32
  }
  func.func @transform_4(%arg0: i32) -> i32 {
    %c0_i32 = arith.constant 0 : i32
    %c0_i32_0 = arith.constant 0 : i32
    return %c0_i32 : i32
  }
  func.func @transform_5(%arg0: i32) -> (i32, i32) {
    %c0_i32 = arith.constant 0 : i32
    %c0_i32_0 = arith.constant 0 : i32
    return %arg0, %c0_i32 : i32, i32
  }
}

</mosaic_0001>

<llo_original>
// kernel: tpu_custom_call.1
$region0: #{tpu_custom_call.1}
  #allocation0 [shape = 'u32[]', space=smem, size = 0x4, offset = 0x4, fixed_abs, tag = 'smem constant byte address 0x4 - core index']
  #allocation1 [shape = 'u32[72,128]{1,0:T(1,128)}', space=vmem, size = 0x9000, scoped, tag = 'internal scratch']
  #allocation2 [shape = 'f32[1]{0:T(128)S(6)}', space=smem, size = 0x200, scoped, tag = 'scoped memory for tpu_custom_call.1']
  %s0 = inlined_call_operand.hbm [shape: f32[8,128], index: 0, kind: input, shape index: {}]
  %s1 = inlined_call_operand.vmem [shape: f32[20], index: 1, kind: input, shape index: {}]
  %s2 = inlined_call_operand.vmem [shape: f32[20], index: 2, kind: input, shape index: {}]
  %s3 = inlined_call_operand.vmem [shape: f32[20], index: 3, kind: input, shape index: {}]
  %s4 = inlined_call_operand.<no memory space> [shape: f32[1], index: 4, kind: input, shape index: {}]
  %s5 = inlined_call_operand.hbm [shape: f32[8,128], index: 5, kind: output, shape index: {}]
  %s6 = sld [smem:[#allocation0]]
  $region46: #{tpu_custom_call.1} parent=0
    _
  %s8 = ssub.s32 1, %s6
  %s9 = scalar_select 0, %s8, %s6
  %10 = sst [smem:[#allocation2]] %s4
  $region1: #{tpu_custom_call.1} parent=0
    #allocation3 [shape = 'u8[4096]{0}', space=vmem, size = 0x1000, scoped, tag = 'input window, operand 0, single buffered']
    #allocation4 [shape = 's32[1]{0}', space=sflag, size = 0x4, scoped, tag = 'scoped memory for tpu_custom_call.1']
    #allocation5 [shape = 's32[1]{0}', space=sflag, size = 0x4, scoped, tag = 'scoped memory for tpu_custom_call.1']
    #allocation6 [shape = 's32[1]{0}', space=sflag, size = 0x4, scoped, tag = 'scoped memory for tpu_custom_call.1']
    #allocation7 [shape = 'u8[512]{0}', space=smem, size = 0x200, scoped, tag = 'input window, operand 1, single buffered']
    #allocation8 [shape = 'u8[512]{0}', space=smem, size = 0x200, scoped, tag = 'input window, operand 2, single buffered']
    #allocation9 [shape = 's32[1]{0}', space=sflag, size = 0x4, scoped, tag = 'scoped memory for tpu_custom_call.1']
    #allocation10 [shape = 'u8[512]{0}', space=smem, size = 0x200, scoped, tag = 'input window, operand 3, single buffered']
    #allocation11 [shape = 'u8[4096]{0}', space=vmem, size = 0x1000, scoped, tag = 'output window, operand 0, single buffered']
    %11 = vsyncpa [#allocation4], 0
    %12 = vsyncpa [#allocation6], 0
    %13 = vsyncpa [#allocation9], 0
    %14 = vsyncpa [#allocation5], 0
    // Predicated region
    $region2: #{tpu_custom_call.1} parent=1 // pred_check
      _
    $region3: #{tpu_custom_call.1} parent=1 // pred_check_branch
      %16 = sbr.rel (0) target = $region5
    $region4: #{tpu_custom_call.1} parent=1 // pred_region
      %18 = vsyncadd [#allocation4], 0
      %s20 = sshll.u32 %s0, 4
      %s21 = int_to_ptr.hbm [resolvable:$true] %s20
      %s22 = sshll.u32 [#allocation3], 4
      %s23 = int_to_ptr.vmem [resolvable:$true] %s22
      %25 = dma.hbm_to_vmem [thread:$0]  %s21, 128, %s23, [#allocation4]
    $region5: #{tpu_custom_call.1} parent=1 // pred_fallthru
      _
    // Predicated region
    $region6: #{tpu_custom_call.1} parent=1 // pred_check
      _
    $region7: #{tpu_custom_call.1} parent=1 // pred_check_branch
      %27 = sbr.rel (0) target = $region9
    $region8: #{tpu_custom_call.1} parent=1 // pred_region
      %29 = vsyncadd [#allocation6], 0
      %s31 = sshll.u32 %s1, 4
      %s32 = int_to_ptr.vmem [resolvable:$true] %s31
      %34 = dma.vmem_to_smem %s32, 16, [#allocation7], [#allocation6]
    $region9: #{tpu_custom_call.1} parent=1 // pred_fallthru
      _
    // Predicated region
    $region10: #{tpu_custom_call.1} parent=1 // pred_check
      _
    $region11: #{tpu_custom_call.1} parent=1 // pred_check_branch
      %36 = sbr.rel (0) target = $region13
    $region12: #{tpu_custom_call.1} parent=1 // pred_region
      %38 = vsyncadd [#allocation9], 0
      %s40 = sshll.u32 %s2, 4
      %s41 = int_to_ptr.vmem [resolvable:$true] %s40
      %43 = dma.vmem_to_smem %s41, 16, [#allocation8], [#allocation9]
    $region13: #{tpu_custom_call.1} parent=1 // pred_fallthru
      _
    // Predicated region
    $region14: #{tpu_custom_call.1} parent=1 // pred_check
      _
    $region15: #{tpu_custom_call.1} parent=1 // pred_check_branch
      %45 = sbr.rel (0) target = $region17
    $region16: #{tpu_custom_call.1} parent=1 // pred_region
      %47 = vsyncadd [#allocation9], 0
      %s49 = sshll.u32 %s3, 4
      %s50 = int_to_ptr.vmem [resolvable:$true] %s49
      %52 = dma.vmem_to_smem %s50, 16, [#allocation10], [#allocation9]
    $region17: #{tpu_custom_call.1} parent=1 // pred_fallthru
      _
    // Predicated region
    $region18: #{tpu_custom_call.1} parent=1 // pred_check
      _
    $region19: #{tpu_custom_call.1} parent=1 // pred_check_branch
      %54 = sbr.rel (0) target = $region21
    $region20: #{tpu_custom_call.1} parent=1 // pred_region
      _
    $region21: #{tpu_custom_call.1} parent=1 // pred_fallthru
      _
    // Predicated region
    $region22: #{tpu_custom_call.1} parent=1 // pred_check
      _
    $region23: #{tpu_custom_call.1} parent=1 // pred_check_branch
      %56 = sbr.rel (0) target = $region25
    $region24: #{tpu_custom_call.1} parent=1 // pred_region
      %58 = dma.done [#allocation4], 128
    $region25: #{tpu_custom_call.1} parent=1 // pred_fallthru
      _
    // Predicated region
    $region26: #{tpu_custom_call.1} parent=1 // pred_check
      _
    $region27: #{tpu_custom_call.1} parent=1 // pred_check_branch
      %60 = sbr.rel (0) target = $region29
    $region28: #{tpu_custom_call.1} parent=1 // pred_region
      %62 = dma.done [#allocation6], 16
    $region29: #{tpu_custom_call.1} parent=1 // pred_fallthru
      _
    // Predicated region
    $region30: #{tpu_custom_call.1} parent=1 // pred_check
      _
    $region31: #{tpu_custom_call.1} parent=1 // pred_check_branch
      %64 = sbr.rel (0) target = $region33
    $region32: #{tpu_custom_call.1} parent=1 // pred_region
      %66 = dma.done [#allocation9], 16
    $region33: #{tpu_custom_call.1} parent=1 // pred_fallthru
      _
    // Predicated region
    $region34: #{tpu_custom_call.1} parent=1 // pred_check
      _
    $region35: #{tpu_custom_call.1} parent=1 // pred_check_branch
      %68 = sbr.rel (0) target = $region37
    $region36: #{tpu_custom_call.1} parent=1 // pred_region
      %70 = dma.done [#allocation9], 16
    $region37: #{tpu_custom_call.1} parent=1 // pred_fallthru
      _
    %71 = sfence
    %s72 = sld [smem:[#allocation2]]
    %v73 = vld [vmem:[#allocation3] sm:$0xff]
    %s74 = sld [smem:[#allocation7]]
    %v75 = vstv %s74
    %v76 = vmul.f32 %v73, %v75
    %s77 = sld [smem:[#allocation8]]
    %v78 = vstv %s77
    %v79 = vadd.f32 %v76, %v78
    %v80 = vmax.f32 %v79, 0.0
    %s81 = sld [smem:[#allocation10]]
    %v82 = vstv %s81
    %v83 = vmul.f32 %v80, %v82
    %v84 = vadd.f32 %v83, 0.0
    %s85 = sld [smem:[#allocation7 + $0x1]]
    %v86 = vstv %s85
    %v87 = vmul.f32 %v73, %v86
    %s88 = sld [smem:[#allocation8 + $0x1]]
    %v89 = vstv %s88
    %v90 = vadd.f32 %v87, %v89
    %v91 = vmax.f32 %v90, 0.0
    %s92 = sld [smem:[#allocation10 + $0x1]]
    %v93 = vstv %s92
    %v94 = vmul.f32 %v91, %v93
    %v95 = vadd.f32 %v84, %v94
    %s96 = sld [smem:[#allocation7 + $0x2]]
    %v97 = vstv %s96
    %v98 = vmul.f32 %v73, %v97
    %s99 = sld [smem:[#allocation8 + $0x2]]
    %v100 = vstv %s99
    %v101 = vadd.f32 %v98, %v100
    %v102 = vmax.f32 %v101, 0.0
    %s103 = sld [smem:[#allocation10 + $0x2]]
    %v104 = vstv %s103
    %v105 = vmul.f32 %v102, %v104
    %v106 = vadd.f32 %v95, %v105
    %s107 = sld [smem:[#allocation7 + $0x3]]
    %v108 = vstv %s107
    %v109 = vmul.f32 %v73, %v108
    %s110 = sld [smem:[#allocation8 + $0x3]]
    %v111 = vstv %s110
    %v112 = vadd.f32 %v109, %v111
    %v113 = vmax.f32 %v112, 0.0
    %s114 = sld [smem:[#allocation10 + $0x3]]
    %v115 = vstv %s114
    %v116 = vmul.f32 %v113, %v115
    %v117 = vadd.f32 %v106, %v116
    %s118 = sld [smem:[#allocation7 + $0x4]]
    %v119 = vstv %s118
    %v120 = vmul.f32 %v73, %v119
    %s121 = sld [smem:[#allocation8 + $0x4]]
    %v122 = vstv %s121
    %v123 = vadd.f32 %v120, %v122
    %v124 = vmax.f32 %v123, 0.0
    %s125 = sld [smem:[#allocation10 + $0x4]]
    %v126 = vstv %s125
    %v127 = vmul.f32 %v124, %v126
    %v128 = vadd.f32 %v117, %v127
    %s129 = sld [smem:[#allocation7 + $0x5]]
    %v130 = vstv %s129
    %v131 = vmul.f32 %v73, %v130
    %s132 = sld [smem:[#allocation8 + $0x5]]
    %v133 = vstv %s132
    %v134 = vadd.f32 %v131, %v133
    %v135 = vmax.f32 %v134, 0.0
    %s136 = sld [smem:[#allocation10 + $0x5]]
    %v137 = vstv %s136
    %v138 = vmul.f32 %v135, %v137
    %v139 = vadd.f32 %v128, %v138
    %s140 = sld [smem:[#allocation7 + $0x6]]
    %v141 = vstv %s140
    %v142 = vmul.f32 %v73, %v141
    %s143 = sld [smem:[#allocation8 + $0x6]]
    %v144 = vstv %s143
    %v145 = vadd.f32 %v142, %v144
    %v146 = vmax.f32 %v145, 0.0
    %s147 = sld [smem:[#allocation10 + $0x6]]
    %v148 = vstv %s147
    %v149 = vmul.f32 %v146, %v148
    %v150 = vadd.f32 %v139, %v149
    %s151 = sld [smem:[#allocation7 + $0x7]]
    %v152 = vstv %s151
    %v153 = vmul.f32 %v73, %v152
    %s154 = sld [smem:[#allocation8 + $0x7]]
    %v155 = vstv %s154
    %v156 = vadd.f32 %v153, %v155
    %v157 = vmax.f32 %v156, 0.0
    %s158 = sld [smem:[#allocation10 + $0x7]]
    %v159 = vstv %s158
    %v160 = vmul.f32 %v157, %v159
    %v161 = vadd.f32 %v150, %v160
    %s162 = sld [smem:[#allocation7 + $0x8]]
    %v163 = vstv %s162
    %v164 = vmul.f32 %v73, %v163
    %s165 = sld [smem:[#allocation8 + $0x8]]
    %v166 = vstv %s165
    %v167 = vadd.f32 %v164, %v166
    %v168 = vmax.f32 %v167, 0.0
    %s169 = sld [smem:[#allocation10 + $0x8]]
    %v170 = vstv %s169
    %v171 = vmul.f32 %v168, %v170
    %v172 = vadd.f32 %v161, %v171
    %s173 = sld [smem:[#allocation7 + $0x9]]
    %v174 = vstv %s173
    %v175 = vmul.f32 %v73, %v174
    %s176 = sld [smem:[#allocation8 + $0x9]]
    %v177 = vstv %s176
    %v178 = vadd.f32 %v175, %v177
    %v179 = vmax.f32 %v178, 0.0
    %s180 = sld [smem:[#allocation10 + $0x9]]
    %v181 = vstv %s180
    %v182 = vmul.f32 %v179, %v181
    %v183 = vadd.f32 %v172, %v182
    %s184 = sld [smem:[#allocation7 + $0xa]]
    %v185 = vstv %s184
    %v186 = vmul.f32 %v73, %v185
    %s187 = sld [smem:[#allocation8 + $0xa]]
    %v188 = vstv %s187
    %v189 = vadd.f32 %v186, %v188
    %v190 = vmax.f32 %v189, 0.0
    %s191 = sld [smem:[#allocation10 + $0xa]]
    %v192 = vstv %s191
    %v193 = vmul.f32 %v190, %v192
    %v194 = vadd.f32 %v183, %v193
    %s195 = sld [smem:[#allocation7 + $0xb]]
    %v196 = vstv %s195
    %v197 = vmul.f32 %v73, %v196
    %s198 = sld [smem:[#allocation8 + $0xb]]
    %v199 = vstv %s198
    %v200 = vadd.f32 %v197, %v199
    %v201 = vmax.f32 %v200, 0.0
    %s202 = sld [smem:[#allocation10 + $0xb]]
    %v203 = vstv %s202
    %v204 = vmul.f32 %v201, %v203
    %v205 = vadd.f32 %v194, %v204
    %s206 = sld [smem:[#allocation7 + $0xc]]
    %v207 = vstv %s206
    %v208 = vmul.f32 %v73, %v207
    %s209 = sld [smem:[#allocation8 + $0xc]]
    %v210 = vstv %s209
    %v211 = vadd.f32 %v208, %v210
    %v212 = vmax.f32 %v211, 0.0
    %s213 = sld [smem:[#allocation10 + $0xc]]
    %v214 = vstv %s213
    %v215 = vmul.f32 %v212, %v214
    %v216 = vadd.f32 %v205, %v215
    %s217 = sld [smem:[#allocation7 + $0xd]]
    %v218 = vstv %s217
    %v219 = vmul.f32 %v73, %v218
    %s220 = sld [smem:[#allocation8 + $0xd]]
    %v221 = vstv %s220
    %v222 = vadd.f32 %v219, %v221
    %v223 = vmax.f32 %v222, 0.0
    %s224 = sld [smem:[#allocation10 + $0xd]]
    %v225 = vstv %s224
    %v226 = vmul.f32 %v223, %v225
    %v227 = vadd.f32 %v216, %v226
    %s228 = sld [smem:[#allocation7 + $0xe]]
    %v229 = vstv %s228
    %v230 = vmul.f32 %v73, %v229
    %s231 = sld [smem:[#allocation8 + $0xe]]
    %v232 = vstv %s231
    %v233 = vadd.f32 %v230, %v232
    %v234 = vmax.f32 %v233, 0.0
    %s235 = sld [smem:[#allocation10 + $0xe]]
    %v236 = vstv %s235
    %v237 = vmul.f32 %v234, %v236
    %v238 = vadd.f32 %v227, %v237
    %s239 = sld [smem:[#allocation7 + $0xf]]
    %v240 = vstv %s239
    %v241 = vmul.f32 %v73, %v240
    %s242 = sld [smem:[#allocation8 + $0xf]]
    %v243 = vstv %s242
    %v244 = vadd.f32 %v241, %v243
    %v245 = vmax.f32 %v244, 0.0
    %s246 = sld [smem:[#allocation10 + $0xf]]
    %v247 = vstv %s246
    %v248 = vmul.f32 %v245, %v247
    %v249 = vadd.f32 %v238, %v248
    %s250 = sld [smem:[#allocation7 + $0x10]]
    %v251 = vstv %s250
    %v252 = vmul.f32 %v73, %v251
    %s253 = sld [smem:[#allocation8 + $0x10]]
    %v254 = vstv %s253
    %v255 = vadd.f32 %v252, %v254
    %v256 = vmax.f32 %v255, 0.0
    %s257 = sld [smem:[#allocation10 + $0x10]]
    %v258 = vstv %s257
    %v259 = vmul.f32 %v256, %v258
    %v260 = vadd.f32 %v249, %v259
    %s261 = sld [smem:[#allocation7 + $0x11]]
    %v262 = vstv %s261
    %v263 = vmul.f32 %v73, %v262
    %s264 = sld [smem:[#allocation8 + $0x11]]
    %v265 = vstv %s264
    %v266 = vadd.f32 %v263, %v265
    %v267 = vmax.f32 %v266, 0.0
    %s268 = sld [smem:[#allocation10 + $0x11]]
    %v269 = vstv %s268
    %v270 = vmul.f32 %v267, %v269
    %v271 = vadd.f32 %v260, %v270
    %s272 = sld [smem:[#allocation7 + $0x12]]
    %v273 = vstv %s272
    %v274 = vmul.f32 %v73, %v273
    %s275 = sld [smem:[#allocation8 + $0x12]]
    %v276 = vstv %s275
    %v277 = vadd.f32 %v274, %v276
    %v278 = vmax.f32 %v277, 0.0
    %s279 = sld [smem:[#allocation10 + $0x12]]
    %v280 = vstv %s279
    %v281 = vmul.f32 %v278, %v280
    %v282 = vadd.f32 %v271, %v281
    %s283 = sld [smem:[#allocation7 + $0x13]]
    %v284 = vstv %s283
    %v285 = vmul.f32 %v73, %v284
    %s286 = sld [smem:[#allocation8 + $0x13]]
    %v287 = vstv %s286
    %v288 = vadd.f32 %v285, %v287
    %v289 = vmax.f32 %v288, 0.0
    %s290 = sld [smem:[#allocation10 + $0x13]]
    %v291 = vstv %s290
    %v292 = vmul.f32 %v289, %v291
    %v293 = vadd.f32 %v282, %v292
    %v294 = vstv %s72
    %v295 = vadd.f32 %v293, %v294
    %296 = vst [vmem:[#allocation11] sm:$0xff] %v295
    // Predicated region
    $region38: #{tpu_custom_call.1} parent=1 // pred_check
      _
    $region39: #{tpu_custom_call.1} parent=1 // pred_check_branch
      %298 = sbr.rel (0) target = $region41
    $region40: #{tpu_custom_call.1} parent=1 // pred_region
      %300 = vsyncadd [#allocation5], 0
      %s302 = sshll.u32 [#allocation11], 4
      %s303 = int_to_ptr.vmem [resolvable:$true] %s302
      %s304 = sshll.u32 %s5, 4
      %s305 = int_to_ptr.hbm [resolvable:$true] %s304
      %307 = dma.vmem_to_hbm [thread:$0]  %s303, 128, %s305, [#allocation5]
    $region41: #{tpu_custom_call.1} parent=1 // pred_fallthru
      _
    // Predicated region
    $region42: #{tpu_custom_call.1} parent=1 // pred_check
      _
    $region43: #{tpu_custom_call.1} parent=1 // pred_check_branch
      %309 = sbr.rel (0) target = $region45
    $region44: #{tpu_custom_call.1} parent=1 // pred_region
      %311 = dma.done [#allocation5], 128
    $region45: #{tpu_custom_call.1} parent=1 // pred_fallthru
      _
    %312 = vsyncpa [#allocation4], 1
    %313 = vsyncpa [#allocation5], 1
    %314 = vsyncpa [#allocation6], 1
    %315 = vsyncpa [#allocation9], 1

</llo_original>
